<compile_context>
chip_gen: v6e
topology: v6e:2x2x1
jax: 0.10.0
libtpu: 0.0.40
codegen_flags: <defaults>
</compile_context>

<pallas_src>
import functools
import math

import jax
import jax.numpy as jnp
import numpy as np
from jax import lax
from jax.experimental import pallas as pl
from jax.experimental.pallas import tpu as pltpu


def _round_up(v, m):
    return ((v + m - 1) // m) * m


# ---------------------------------------------------------------------------
# Kernel 1: fused [theta | g | phi] projection (1x1 convs), computed ONCE per
# pixel (not per query tile).  Outputs stored in the compute dtype.
# ---------------------------------------------------------------------------
def _proj_kernel(x_ref, wt_ref, bt_ref, wgp_ref, bgp_ref, theta_ref, gphi_ref,
                 *, mxu_dtype):
    x_m = x_ref[...].astype(mxu_dtype)
    th = jnp.dot(x_m, wt_ref[...], preferred_element_type=jnp.float32) + bt_ref[...]
    gp = jnp.dot(x_m, wgp_ref[...], preferred_element_type=jnp.float32) + bgp_ref[...]
    theta_ref[...] = th.astype(theta_ref.dtype)
    gphi_ref[...] = gp.astype(gphi_ref.dtype)


# ---------------------------------------------------------------------------
# Kernel 2: flash-style attention over the key axis + conv_out + residual.
# ---------------------------------------------------------------------------
def _attn_kernel(theta_ref, gphi_ref, xq_ref, wo_ref, bo_ref, o_ref, *scratch,
                 mode, hw, tk, ic_pad, inv_len, needs_mask, exact_div, mxu_dtype):
    if mode == 'embedded_gaussian':
        acc_sc, m_sc, l_sc = scratch
    else:
        (acc_sc,) = scratch
        m_sc = l_sc = None

    k_idx = pl.program_id(2)
    last_k = pl.num_programs(2) - 1

    @pl.when(k_idx == 0)
    def _init():
        acc_sc[...] = jnp.zeros(acc_sc.shape, jnp.float32)
        if mode == 'embedded_gaussian':
            m_sc[...] = jnp.full(m_sc.shape, -jnp.inf, jnp.float32)
            l_sc[...] = jnp.zeros(l_sc.shape, jnp.float32)

    g_x = gphi_ref[:, :ic_pad]          # (TK, ICp) compute dtype
    phi_x = gphi_ref[:, ic_pad:]        # (TK, ICp) compute dtype

    # s = theta @ phi^T  (contract channel dim of both) -> (TQ, TK), f32 accumulate.
    # The sqrt(IC) use_scale factor is already folded into theta's weights upstream.
    # TODO(synk): if the bundle dump shows a per-step vxpose of phi here, emit phi
    # pre-transposed ((ICp, HW) tiles) from the projection kernel instead.
    s = lax.dot_general(theta_ref[...], phi_x,
                        dimension_numbers=(((1,), (1,)), ((), ())),
                        preferred_element_type=jnp.float32)

    if needs_mask:
        # HW was padded up to a tile multiple; suppress padded key positions.
        kpos = k_idx * tk + lax.broadcasted_iota(jnp.int32, (1, tk), 1)
        valid = kpos < hw
        s = jnp.where(valid, s, -1e30 if mode == 'embedded_gaussian' else 0.0)

    if mode == 'embedded_gaussian':
        # Online (flash) softmax over the key axis; elementwise math kept in f32.
        m_new = jnp.maximum(m_sc[...], jnp.max(s, axis=-1, keepdims=True))
        alpha = jnp.exp(m_sc[...] - m_new)
        p = jnp.exp(s - m_new)
        l_sc[...] = alpha * l_sc[...] + jnp.sum(p, axis=-1, keepdims=True)
        acc_sc[...] = alpha * acc_sc[...] + jnp.dot(
            p.astype(mxu_dtype), g_x, preferred_element_type=jnp.float32)
        m_sc[...] = m_new
    else:  # 'dot_product'
        acc_sc[...] = acc_sc[...] + jnp.dot(
            s.astype(mxu_dtype), g_x, preferred_element_type=jnp.float32)

    @pl.when(k_idx == last_k)
    def _finish():
        if mode == 'embedded_gaussian':
            if exact_div:
                y = acc_sc[...] / l_sc[...]
            else:
                y = acc_sc[...] * pl.reciprocal(l_sc[...], approx=True)   # EUP
        else:
            y = acc_sc[...] * inv_len
        out = (xq_ref[...]                                                 # f32 residual
               + jnp.dot(y.astype(mxu_dtype), wo_ref[...],
                         preferred_element_type=jnp.float32)
               + bo_ref[...])
        o_ref[...] = out.astype(o_ref.dtype)


# ---------------------------------------------------------------------------
# Wrapper
# ---------------------------------------------------------------------------
def nonlocal2d(x, params, *, use_scale=True, mode='embedded_gaussian',
               tq=None, tk=None, compute_dtype=jnp.bfloat16, exact_div=False):
    """NonLocal2D forward. x: (N, C, H, W) float32 (PyTorch NCHW convention).

    params = (wg, bg, wt, bt, wp, bp, wo, bo); 1x1 conv weights stored as (C_in, C_out).
    compute_dtype is the MXU/HBM operand dtype (default bf16; accumulation, the
    residual path and softmax statistics always stay f32).
    """
    assert mode in ('embedded_gaussian', 'dot_product')
    n, c, h, w = x.shape
    hw = h * w
    wg, bg, wt, bt, wp, bp, wo, bo = params
    ic = wg.shape[1]

    # ---- channel padding to lane-dense multiples of 128 (mathematical no-op) ----
    c_pad = _round_up(c, 128)
    ic_pad = _round_up(ic, 128)
    bpe_c = jnp.dtype(compute_dtype).itemsize

    # torch: pairwise_weight /= IC ** (-0.5)  ==  pw *= sqrt(IC); fold into theta weights.
    scale = float(ic) ** 0.5 if (mode == 'embedded_gaussian' and use_scale) else 1.0

    def pad_w(a, rows, cols, s=1.0):
        a = jnp.asarray(a, jnp.float32) * s
        a = jnp.pad(a, ((0, rows - a.shape[0]), (0, cols - a.shape[1])))
        return a.astype(compute_dtype)

    def pad_b(a, cols, s=1.0):
        a = jnp.asarray(a, jnp.float32).reshape(1, -1) * s
        return jnp.pad(a, ((0, 0), (0, cols - a.shape[1])))          # biases stay f32

    wt_p, bt_p = pad_w(wt, c_pad, ic_pad, scale), pad_b(bt, ic_pad, scale)
    wgp_p = jnp.concatenate([pad_w(wg, c_pad, ic_pad), pad_w(wp, c_pad, ic_pad)], axis=1)
    bgp_p = jnp.concatenate([pad_b(bg, ic_pad), pad_b(bp, ic_pad)], axis=1)
    wo_p, bo_p = pad_w(wo, ic_pad, c_pad), pad_b(bo, c_pad)

    # ---- per-generation VMEM budget & default tiles ----
    try:
        vmem_cap = int(pltpu.get_tpu_info().vmem_capacity_bytes)
    except Exception:
        vmem_cap = 64 * 2**20                       # conservative (v7x-sized) fallback
    vmem_budget = int(vmem_cap * 0.82)              # headroom for Mosaic internal scratch
    big_vmem = vmem_cap > 80 * 2**20                # v5e / v6e (128 MiB) vs v7x (64 MiB)
    if tq is None:
        tq = 512 if big_vmem else 256
    if tk is None:
        tk = 512 if big_vmem else 256
    assert tq % 8 == 0 and tk % 8 == 0

    # ---- spatial tiling: pad HW to a tile multiple (mask keys in-kernel) ----
    def choose_tile(target):
        if hw >= target:
            return target
        return _round_up(hw, 128 if hw >= 128 else 8)

    tq_ = choose_tile(tq)
    tk_ = choose_tile(tk)
    hw_pad = _round_up(hw, math.lcm(tq_, tk_))
    # v7x megacore: keep both TensorCores busy on the parallel (batch, q-tile) axes.
    while n * (hw_pad // tq_) < 2 and tq_ % 256 == 0:
        tq_ //= 2
    nq, nk = hw_pad // tq_, hw_pad // tk_
    needs_mask = hw_pad != hw

    # TODO(synk): if the surrounding model runs NHWC, these transposes (full HBM
    # round-trips) can be dropped and the kernels fed/producing NHWC directly.
    x_flat = jnp.transpose(x, (0, 2, 3, 1)).reshape(n, hw, c)
    x_flat = jnp.pad(x_flat, ((0, 0), (0, hw_pad - hw), (0, c_pad - c)))   # f32 residual view

    def _const_spec(arr):
        nd = arr.ndim
        return pl.BlockSpec(arr.shape, lambda *idx, _nd=nd: (0,) * _nd)

    # ---------------- projection pass: [theta | g | phi] once per pixel --------------
    proj_rows = tq_
    proj_est = (2 * proj_rows * c_pad * 4
                + 2 * (c_pad * 3 * ic_pad * bpe_c + 3 * ic_pad * 4)
                + 2 * proj_rows * 3 * ic_pad * bpe_c * 2
                + proj_rows * 3 * ic_pad * 4)
    proj_vmem = int(min(vmem_budget, max(32 * 2**20, 2 * proj_est)))
    proj_cost = pl.CostEstimate(
        flops=int(2.0 * n * hw_pad * c_pad * 3 * ic_pad),
        transcendentals=0,
        bytes_accessed=int(n * hw_pad * c_pad * 4
                           + n * hw_pad * 3 * ic_pad * bpe_c
                           + c_pad * 3 * ic_pad * bpe_c))

    theta_all, gphi_all = pl.pallas_call(
        functools.partial(_proj_kernel, mxu_dtype=compute_dtype),
        out_shape=(jax.ShapeDtypeStruct((n, hw_pad, ic_pad), compute_dtype),
                   jax.ShapeDtypeStruct((n, hw_pad, 2 * ic_pad), compute_dtype)),
        grid=(n, hw_pad // proj_rows),
        in_specs=[
            pl.BlockSpec((pl.Squeezed(), proj_rows, c_pad), lambda b, r: (b, r, 0)),
            _const_spec(wt_p), _const_spec(bt_p),
            _const_spec(wgp_p), _const_spec(bgp_p),
        ],
        out_specs=(
            pl.BlockSpec((pl.Squeezed(), proj_rows, ic_pad), lambda b, r: (b, r, 0)),
            pl.BlockSpec((pl.Squeezed(), proj_rows, 2 * ic_pad), lambda b, r: (b, r, 0)),
        ),
        compiler_params=pltpu.CompilerParams(
            dimension_semantics=("parallel", "parallel"),
            vmem_limit_bytes=proj_vmem),
        cost_estimate=proj_cost,
    )(x_flat, wt_p, bt_p, wgp_p, bgp_p)

    # ---------------- attention + conv_out + residual --------------------------------
    scratch_shapes = [pltpu.VMEM((tq_, ic_pad), jnp.float32)]           # acc (f32)
    if mode == 'embedded_gaussian':
        scratch_shapes += [pltpu.VMEM((tq_, 1), jnp.float32),           # running max
                           pltpu.VMEM((tq_, 1), jnp.float32)]           # running sum

    est = (2 * tq_ * ic_pad * bpe_c                       # theta tile (dbl-buffered)
           + 2 * tk_ * 2 * ic_pad * bpe_c                 # [g|phi] tile (dbl-buffered)
           + 2 * 2 * tq_ * c_pad * 4                      # x_q + out tiles (dbl-buffered)
           + 2 * (ic_pad * c_pad * bpe_c + c_pad * 4)     # wo / bo residency
           + tq_ * ic_pad * 4 + 2 * tq_ * 4               # scratch
           + 3 * tq_ * tk_ * 4 + 2 * tq_ * ic_pad * 4)    # s/p + temporaries
    vmem_limit = int(min(vmem_budget, max(32 * 2**20, 2 * est)))

    flops = (4.0 * n * hw_pad * hw_pad * ic_pad           # theta@phi^T and p@g
             + 2.0 * n * hw_pad * ic_pad * c_pad)         # conv_out
    transcendentals = float(n) * hw_pad * hw_pad if mode == 'embedded_gaussian' else 0.0
    bytes_accessed = (n * hw_pad * ic_pad * bpe_c                    # theta (read once)
                      + float(n) * nq * hw_pad * 2 * ic_pad * bpe_c  # key stream, re-read per q-tile
                      + 2.0 * n * hw_pad * c_pad * 4                 # residual in + output writeback
                      + ic_pad * c_pad * bpe_c + c_pad * 4)
    cost = pl.CostEstimate(flops=int(flops), transcendentals=int(transcendentals),
                           bytes_accessed=int(bytes_accessed))

    kernel = functools.partial(
        _attn_kernel, mode=mode, hw=hw, tk=tk_, ic_pad=ic_pad,
        inv_len=1.0 / float(hw), needs_mask=needs_mask,
        exact_div=exact_div, mxu_dtype=compute_dtype)

    out_flat = pl.pallas_call(
        kernel,
        out_shape=jax.ShapeDtypeStruct((n, hw_pad, c_pad), x.dtype),
        grid=(n, nq, nk),
        in_specs=[
            pl.BlockSpec((pl.Squeezed(), tq_, ic_pad), lambda b, q, k: (b, q, 0)),      # theta
            pl.BlockSpec((pl.Squeezed(), tk_, 2 * ic_pad), lambda b, q, k: (b, k, 0)),  # [g|phi]
            pl.BlockSpec((pl.Squeezed(), tq_, c_pad), lambda b, q, k: (b, q, 0)),       # x (residual)
            _const_spec(wo_p), _const_spec(bo_p),                                       # conv_out
        ],
        out_specs=pl.BlockSpec((pl.Squeezed(), tq_, c_pad), lambda b, q, k: (b, q, 0)),
        scratch_shapes=scratch_shapes,
        compiler_params=pltpu.CompilerParams(
            dimension_semantics=("parallel", "parallel", "arbitrary"),
            vmem_limit_bytes=vmem_limit),
        cost_estimate=cost,
    )(theta_all, gphi_all, x_flat, wo_p, bo_p)

    out = out_flat[:, :hw, :c].reshape(n, h, w, c)
    return jnp.transpose(out, (0, 3, 1, 2))


# ---------------------------------------------------------------------------
# Pure-JAX reference with identical semantics (for correctness checks).
# ---------------------------------------------------------------------------
def nonlocal2d_ref(x, params, use_scale=True, mode='embedded_gaussian'):
    n, c, h, w = x.shape
    hw = h * w
    wg, bg, wt, bt, wp, bp, wo, bo = params
    xf = jnp.transpose(x, (0, 2, 3, 1)).reshape(n, hw, c)
    g_x = xf @ wg + bg.reshape(1, -1)
    theta = xf @ wt + bt.reshape(1, -1)
    phi = xf @ wp + bp.reshape(1, -1)
    pw = jnp.einsum('nqc,nkc->nqk', theta, phi)
    if mode == 'embedded_gaussian':
        if use_scale:
            pw = pw / (theta.shape[-1] ** (-0.5))   # matches the torch module verbatim
        pw = jax.nn.softmax(pw, axis=-1)
    else:
        pw = pw / pw.shape[-1]
    y = jnp.einsum('nqk,nkc->nqc', pw, g_x)
    out = xf + y @ wo + bo.reshape(1, -1)
    return jnp.transpose(out.reshape(n, h, w, c), (0, 3, 1, 2))


if __name__ == "__main__":
    key = jax.random.PRNGKey(0)
    n, c, h, w = 2, 4, 16, 16          # in_channels=4, reduction=2 -> inter_channels=2
    reduction = 2
    ic = c // reduction
    std = 0.01

    ks = jax.random.split(key, 6)
    x = jax.random.normal(ks[0], (n, c, h, w), jnp.float32)

    # 1x1 conv weights stored as (C_in, C_out); biases zero (normal_init zeros biases).
    # conv_out uses normal init here (instead of the module's default zeros_init) so
    # the non-local branch contributes a nonzero signal to the check.
    wg = std * jax.random.normal(ks[1], (c, ic), jnp.float32)
    wt = std * jax.random.normal(ks[2], (c, ic), jnp.float32)
    wp = std * jax.random.normal(ks[3], (c, ic), jnp.float32)
    wo = std * jax.random.normal(ks[4], (ic, c), jnp.float32)
    bg = jnp.zeros((1, ic), jnp.float32)
    bt = jnp.zeros((1, ic), jnp.float32)
    bp = jnp.zeros((1, ic), jnp.float32)
    bo = jnp.zeros((1, c), jnp.float32)
    params = (wg, bg, wt, bt, wp, bp, wo, bo)

    ref = jax.block_until_ready(nonlocal2d_ref(x, params))

    # 1) embedded_gaussian, f32 MXU path, small tiles so the multi-key-block
    #    online-softmax path is exercised (grid = (2, 2, 2)).
    out = jax.block_until_ready(
        nonlocal2d(x, params, tq=128, tk=128, compute_dtype=jnp.float32, exact_div=True))
    assert out.shape == (n, c, h, w)
    np.testing.assert_allclose(np.asarray(out), np.asarray(ref), atol=1e-5, rtol=1e-5)

    # 2) non-factorable spatial size (15x15 -> HW=225) exercises the padded-HW +
    #    key-masking path instead of a full-extent fallback tile.
    x2 = jax.random.normal(ks[5], (1, c, 15, 15), jnp.float32)
    out2 = jax.block_until_ready(
        nonlocal2d(x2, params, tq=128, tk=128, compute_dtype=jnp.float32, exact_div=True))
    ref2 = nonlocal2d_ref(x2, params)
    np.testing.assert_allclose(np.asarray(out2), np.asarray(ref2), atol=1e-5, rtol=1e-5)

    # 3) dot_product mode.
    out_dp = jax.block_until_ready(
        nonlocal2d(x, params, mode='dot_product', tq=128, tk=64,
                   compute_dtype=jnp.float32, exact_div=True))
    ref_dp = nonlocal2d_ref(x, params, mode='dot_product')
    np.testing.assert_allclose(np.asarray(out_dp), np.asarray(ref_dp), atol=1e-5, rtol=1e-5)

    # 4) default path: bf16 MXU operands (rated MXU path on v5e/v6e/v7x), per-chip
    #    tile/VMEM defaults, looser tolerance (residual stays f32, branch is bf16).
    out_bf = jax.block_until_ready(nonlocal2d(x, params))
    np.testing.assert_allclose(np.asarray(out_bf), np.asarray(ref), atol=3e-2, rtol=3e-2)

    print("KERNEL_OK")
</pallas_src>

<mosaic_0001>
module attributes {stable_mosaic.version = 11 : i64} {
  func.func @_proj_kernel(%arg0: i32, %arg1: i32, %arg2: memref<1x128x128xf32, #tpu.memory_space<vmem>>, %arg3: memref<128x128xf32, #tpu.memory_space<vmem>>, %arg4: memref<1x128xf32, #tpu.memory_space<vmem>>, %arg5: memref<128x256xf32, #tpu.memory_space<vmem>>, %arg6: memref<1x256xf32, #tpu.memory_space<vmem>>, %arg7: memref<1x128x128xf32, #tpu.memory_space<vmem>>, %arg8: memref<1x128x256xf32, #tpu.memory_space<vmem>>) attributes {dimension_semantics = [#tpu.dimension_semantics<parallel>, #tpu.dimension_semantics<parallel>], iteration_bounds = array<i64: 2, 2>, scalar_prefetch = 0 : i64, scratch_operands = 0 : i64, tpu.core_type = #tpu.core_type<tc>, window_params = [{transform_indices = @transform_0, window_bounds = array<i64: 1, 128, 128>}, {pipeline_mode = #tpu.pipeline_mode<synchronous>, transform_indices = @transform_1, window_bounds = array<i64: 128, 128>}, {pipeline_mode = #tpu.pipeline_mode<synchronous>, transform_indices = @transform_2, window_bounds = array<i64: 1, 128>}, {pipeline_mode = #tpu.pipeline_mode<synchronous>, transform_indices = @transform_3, window_bounds = array<i64: 128, 256>}, {pipeline_mode = #tpu.pipeline_mode<synchronous>, transform_indices = @transform_4, window_bounds = array<i64: 1, 256>}, {transform_indices = @transform_5, window_bounds = array<i64: 1, 128, 128>}, {transform_indices = @transform_6, window_bounds = array<i64: 1, 128, 256>}]} {
    %c0 = arith.constant 0 : index
    %c0_0 = arith.constant 0 : index
    %c0_1 = arith.constant 0 : index
    %0 = vector.load %arg2[%c0, %c0_0, %c0_1] : memref<1x128x128xf32, #tpu.memory_space<vmem>>, vector<1x128x128xf32>
    %1 = vector.shape_cast %0 : vector<1x128x128xf32> to vector<128x128xf32>
    %c0_2 = arith.constant 0 : index
    %c0_3 = arith.constant 0 : index
    %2 = vector.load %arg3[%c0_2, %c0_3] : memref<128x128xf32, #tpu.memory_space<vmem>>, vector<128x128xf32>
    %cst = arith.constant dense<0.000000e+00> : vector<128x128xf32>
    %3 = tpu.matmul %1, %2, %cst {dimension_numbers = #tpu.dot_dimension_numbers<[1], [0], [0], [1], [0, 0, 1, 1], [], []>} : vector<128x128xf32>, vector<128x128xf32>, vector<128x128xf32> -> vector<128x128xf32>
    %c0_4 = arith.constant 0 : index
    %c0_5 = arith.constant 0 : index
    %4 = vector.load %arg4[%c0_4, %c0_5] : memref<1x128xf32, #tpu.memory_space<vmem>>, vector<1x128xf32>
    %5 = vector.broadcast %4 : vector<1x128xf32> to vector<128x128xf32>
    %6 = arith.addf %3, %5 : vector<128x128xf32>
    %c0_6 = arith.constant 0 : index
    %c0_7 = arith.constant 0 : index
    %7 = vector.load %arg5[%c0_6, %c0_7] : memref<128x256xf32, #tpu.memory_space<vmem>>, vector<128x256xf32>
    %cst_8 = arith.constant dense<0.000000e+00> : vector<128x256xf32>
    %8 = tpu.matmul %1, %7, %cst_8 {dimension_numbers = #tpu.dot_dimension_numbers<[1], [0], [0], [1], [0, 0, 1, 1], [], []>} : vector<128x128xf32>, vector<128x256xf32>, vector<128x256xf32> -> vector<128x256xf32>
    %c0_9 = arith.constant 0 : index
    %c0_10 = arith.constant 0 : index
    %9 = vector.load %arg6[%c0_9, %c0_10] : memref<1x256xf32, #tpu.memory_space<vmem>>, vector<1x256xf32>
    %10 = vector.broadcast %9 : vector<1x256xf32> to vector<128x256xf32>
    %11 = arith.addf %8, %10 : vector<128x256xf32>
    %c0_11 = arith.constant 0 : index
    %c0_12 = arith.constant 0 : index
    %c0_13 = arith.constant 0 : index
    %12 = vector.load %arg7[%c0_11, %c0_12, %c0_13] : memref<1x128x128xf32, #tpu.memory_space<vmem>>, vector<1x128x128xf32>
    %13 = vector.shape_cast %12 : vector<1x128x128xf32> to vector<128x128xf32>
    %14 = vector.shape_cast %6 : vector<128x128xf32> to vector<1x128x128xf32>
    tpu.vector_store %arg7[%c0_11, %c0_12, %c0_13], %14 {strides = array<i32>} : memref<1x128x128xf32, #tpu.memory_space<vmem>>, vector<1x128x128xf32>,
    %c0_14 = arith.constant 0 : index
    %c0_15 = arith.constant 0 : index
    %c0_16 = arith.constant 0 : index
    %15 = vector.load %arg8[%c0_14, %c0_15, %c0_16] : memref<1x128x256xf32, #tpu.memory_space<vmem>>, vector<1x128x256xf32>
    %16 = vector.shape_cast %15 : vector<1x128x256xf32> to vector<128x256xf32>
    %17 = vector.shape_cast %11 : vector<128x256xf32> to vector<1x128x256xf32>
    tpu.vector_store %arg8[%c0_14, %c0_15, %c0_16], %17 {strides = array<i32>} : memref<1x128x256xf32, #tpu.memory_space<vmem>>, vector<1x128x256xf32>,
    return
  }
  func.func @transform_0(%arg0: i32, %arg1: i32) -> (i32, i32, i32) {
    %c0_i32 = arith.constant 0 : i32
    %c0_i32_0 = arith.constant 0 : i32
    return %arg0, %arg1, %c0_i32 : i32, i32, i32
  }
  func.func @transform_1(%arg0: i32, %arg1: i32) -> (i32, i32) {
    %c0_i32 = arith.constant 0 : i32
    %c0_i32_0 = arith.constant 0 : i32
    %c0_i32_1 = arith.constant 0 : i32
    return %c0_i32, %c0_i32_0 : i32, i32
  }
  func.func @transform_2(%arg0: i32, %arg1: i32) -> (i32, i32) {
    %c0_i32 = arith.constant 0 : i32
    %c0_i32_0 = arith.constant 0 : i32
    %c0_i32_1 = arith.constant 0 : i32
    return %c0_i32, %c0_i32_0 : i32, i32
  }
  func.func @transform_3(%arg0: i32, %arg1: i32) -> (i32, i32) {
    %c0_i32 = arith.constant 0 : i32
    %c0_i32_0 = arith.constant 0 : i32
    %c0_i32_1 = arith.constant 0 : i32
    return %c0_i32, %c0_i32_0 : i32, i32
  }
  func.func @transform_4(%arg0: i32, %arg1: i32) -> (i32, i32) {
    %c0_i32 = arith.constant 0 : i32
    %c0_i32_0 = arith.constant 0 : i32
    %c0_i32_1 = arith.constant 0 : i32
    return %c0_i32, %c0_i32_0 : i32, i32
  }
  func.func @transform_5(%arg0: i32, %arg1: i32) -> (i32, i32, i32) {
    %c0_i32 = arith.constant 0 : i32
    %c0_i32_0 = arith.constant 0 : i32
    return %arg0, %arg1, %c0_i32 : i32, i32, i32
  }
  func.func @transform_6(%arg0: i32, %arg1: i32) -> (i32, i32, i32) {
    %c0_i32 = arith.constant 0 : i32
    %c0_i32_0 = arith.constant 0 : i32
    return %arg0, %arg1, %c0_i32 : i32, i32, i32
  }
}

</mosaic_0001>

<llo_original>
// kernel: tpu_custom_call.1
$region0: #{tpu_custom_call.1}
  #allocation0 [shape = 'u32[]', space=smem, size = 0x4, offset = 0x4, fixed_abs, tag = 'smem constant byte address 0x4 - core index']
  #allocation1 [shape = 'u32[144,128]{1,0:T(1,128)}', space=vmem, size = 0x12000, scoped, tag = 'internal scratch']
  %s0 = inlined_call_operand.hbm [shape: f32[2,256,128], index: 0, kind: input, shape index: {}]
  %s1 = inlined_call_operand.hbm [shape: f32[128,128], index: 1, kind: input, shape index: {}]
  %s2 = inlined_call_operand.vmem [shape: f32[1,128], index: 2, kind: input, shape index: {}]
  %s3 = inlined_call_operand.hbm [shape: f32[128,256], index: 3, kind: input, shape index: {}]
  %s4 = inlined_call_operand.vmem [shape: f32[1,256], index: 4, kind: input, shape index: {}]
  %s5 = inlined_call_operand.hbm [shape: f32[2,256,128], index: 5, kind: output, shape index: {0}]
  %s6 = inlined_call_operand.hbm [shape: f32[2,256,256], index: 6, kind: output, shape index: {1}]
  %7 = xla_tuple %s5, %s6
  %s8 = sld [smem:[#allocation0]]
  $region73: #{tpu_custom_call.1} parent=0
    _
  %s10 = ssub.s32 1, %s8
  %s11 = scalar_select 0, %s10, %s8
  $region1: #{tpu_custom_call.1} parent=0
    #allocation2 [shape = 'u8[131072]{0}', space=vmem, size = 0x20000, scoped, tag = 'input window, operand 0']
    #allocation3 [shape = 's32[2]{0}', space=sflag, size = 0x8, scoped, tag = 'scoped memory for tpu_custom_call.1']
    #allocation4 [shape = 's32[2]{0}', space=sflag, size = 0x8, scoped, tag = 'scoped memory for tpu_custom_call.1']
    #allocation5 [shape = 'u8[65536]{0}', space=vmem, size = 0x10000, scoped, tag = 'input window, operand 1, single buffered']
    #allocation6 [shape = 's32[1]{0}', space=sflag, size = 0x4, scoped, tag = 'scoped memory for tpu_custom_call.1']
    #allocation7 [shape = 'u8[131072]{0}', space=vmem, size = 0x20000, scoped, tag = 'input window, operand 3, single buffered']
    #allocation8 [shape = 'u8[131072]{0}', space=vmem, size = 0x20000, scoped, tag = 'output window, operand 0']
    #allocation9 [shape = 'u8[262144]{0}', space=vmem, size = 0x40000, scoped, tag = 'output window, operand 1']
    #allocation10 [shape = 's32[2]{0}', space=sflag, size = 0x8, scoped, tag = 'scoped memory for tpu_custom_call.1']
    %12 = vsyncpa [#allocation3], 0
    %s13 = scalar_lea.sflag [#allocation3], 1
    %14 = vsyncpa %s13, 0
    %15 = vsyncpa [#allocation6], 0
    %16 = vsyncpa [#allocation4], 0
    %s17 = scalar_lea.sflag [#allocation4], 1
    %18 = vsyncpa %s17, 0
    %19 = vsyncpa [#allocation10], 0
    %s20 = scalar_lea.sflag [#allocation10], 1
    %21 = vsyncpa %s20, 0
    loop: start=0, step=1, limit=6
    $region2: #{tpu_custom_call.1} parent=1 // loop_pre_header
      _
    $region3: #{tpu_custom_call.1} parent=1 // loop_header
      %s23 = sphi 0, %s27
      %p24 = scmp.ge.s32.totalorder %s23, 6
      %s30 = sphi 0, %s42
      %s31 = sphi 0, %s38
      %s32 = sphi 0, %s30
      %s33 = sphi 0, %s31
      %s34 = sphi 0, %s32
      %s35 = sphi 0, %s33
      %s47 = sphi 0, %s49
      %s50 = sphi 0, %s47
      %s51 = sphi 0, %s50
      %s67 = sphi 0, %s51
      %s71 = sphi 0, %s71
      %s73 = sphi 0, %s71
      %s74 = sphi 0, %s73
      %s88 = sphi 0, %s74
      %s92 = sphi 0, %s92
      %s94 = sphi 0, %s92
      %s95 = sphi 0, %s94
      %s109 = sphi 0, %s95
      %s113 = sphi 0, %s113
      %s115 = sphi 0, %s113
      %s116 = sphi 0, %s115
      %s130 = sphi 0, %s116
      %s134 = sphi 0, %s134
      %s136 = sphi 0, %s134
      %s137 = sphi 0, %s136
      %s151 = sphi 0, %s137
      %s159 = sphi 0, %s161
      %s162 = sphi 0, %s159
      %s163 = sphi 0, %s162
      %s179 = sphi 0, %s163
      %s187 = sphi 0, %s189
      %s190 = sphi 0, %s187
      %s191 = sphi 0, %s190
      %s207 = sphi 0, %s191
    $region4: #{tpu_custom_call.1} parent=1 // loop_header_branch
      %26 = sbr.rel (%p24) target = $region8
    $region5: #{tpu_custom_call.1} parent=1 // loop_body
      %s28 = ssub.s32 %s23, 1
      %s29 = ssub.s32 %s23, 2
      %s36 = sadd.s32 1, %s31
      %p37 = scmp.ge.s32.totalorder %s36, 2
      %s38 = scalar_select %p37, 0, %s36
      %s39 = sadd.s32 1, %s30
      %s40 = scalar_select %p37, %s39, %s30
      %p41 = scmp.ge.s32.totalorder %s40, 2
      %s42 = scalar_select %p41, 0, %s40
      %s43 = ssub.s32 %s30, %s42
      %s44 = ssub.s32 %s31, %s38
      %s45 = sor.u32 %s43, %s44
      %p46 = scmp.eq.s32.totalorder %s45, 0
      %s48 = sadd.s32 %s47, 1
      %s49 = scalar_select %p46, %s47, %s48
      %p52 = pneg %p46
      %p53 = scmp.eq.s32.totalorder %s23, 3
      %p54 = por %p52, %p53
      %p55 = scmp.ne.s32.totalorder %s47, %s50
      %p56 = scmp.eq.s32.totalorder %s23, 0
      %p57 = por %p55, %p56
      %p58 = scmp.ne.s32.totalorder %s47, %s50
      %p59 = scmp.eq.s32.totalorder %s28, 3
      %p60 = por %p58, %p59
      %p61 = scmp.ne.s32.totalorder %s50, %s51
      %p62 = scmp.eq.s32.totalorder %s28, 0
      %p63 = por %p61, %p62
      %p64 = scmp.ne.s32.totalorder %s50, %s51
      %p65 = scmp.eq.s32.totalorder %s29, 3
      %p66 = por %p64, %p65
      %p68 = scmp.ne.s32.totalorder %s51, %s67
      %p69 = scmp.eq.s32.totalorder %s29, 0
      %p70 = por %p68, %p69
      %s72 = sadd.s32 %s71, 1
      %p75 = scmp.eq.s32.totalorder %s23, 3
      %p76 = scmp.ne.s32.totalorder %s71, %s73
      %p77 = scmp.eq.s32.totalorder %s23, 0
      %p78 = por %p76, %p77
      %p79 = scmp.ne.s32.totalorder %s71, %s73
      %p80 = scmp.eq.s32.totalorder %s28, 3
      %p81 = por %p79, %p80
      %p82 = scmp.ne.s32.totalorder %s73, %s74
      %p83 = scmp.eq.s32.totalorder %s28, 0
      %p84 = por %p82, %p83
      %p85 = scmp.ne.s32.totalorder %s73, %s74
      %p86 = scmp.eq.s32.totalorder %s29, 3
      %p87 = por %p85, %p86
      %p89 = scmp.ne.s32.totalorder %s74, %s88
      %p90 = scmp.eq.s32.totalorder %s29, 0
      %p91 = por %p89, %p90
      %s93 = sadd.s32 %s92, 1
      %p96 = scmp.eq.s32.totalorder %s23, 3
      %p97 = scmp.ne.s32.totalorder %s92, %s94
      %p98 = scmp.eq.s32.totalorder %s23, 0
      %p99 = por %p97, %p98
      %p100 = scmp.ne.s32.totalorder %s92, %s94
      %p101 = scmp.eq.s32.totalorder %s28, 3
      %p102 = por %p100, %p101
      %p103 = scmp.ne.s32.totalorder %s94, %s95
      %p104 = scmp.eq.s32.totalorder %s28, 0
      %p105 = por %p103, %p104
      %p106 = scmp.ne.s32.totalorder %s94, %s95
      %p107 = scmp.eq.s32.totalorder %s29, 3
      %p108 = por %p106, %p107
      %p110 = scmp.ne.s32.totalorder %s95, %s109
      %p111 = scmp.eq.s32.totalorder %s29, 0
      %p112 = por %p110, %p111
      %s114 = sadd.s32 %s113, 1
      %p117 = scmp.eq.s32.totalorder %s23, 3
      %p118 = scmp.ne.s32.totalorder %s113, %s115
      %p119 = scmp.eq.s32.totalorder %s23, 0
      %p120 = por %p118, %p119
      %p121 = scmp.ne.s32.totalorder %s113, %s115
      %p122 = scmp.eq.s32.totalorder %s28, 3
      %p123 = por %p121, %p122
      %p124 = scmp.ne.s32.totalorder %s115, %s116
      %p125 = scmp.eq.s32.totalorder %s28, 0
      %p126 = por %p124, %p125
      %p127 = scmp.ne.s32.totalorder %s115, %s116
      %p128 = scmp.eq.s32.totalorder %s29, 3
      %p129 = por %p127, %p128
      %p131 = scmp.ne.s32.totalorder %s116, %s130
      %p132 = scmp.eq.s32.totalorder %s29, 0
      %p133 = por %p131, %p132
      %s135 = sadd.s32 %s134, 1
      %p138 = scmp.eq.s32.totalorder %s23, 3
      %p139 = scmp.ne.s32.totalorder %s134, %s136
      %p140 = scmp.eq.s32.totalorder %s23, 0
      %p141 = por %p139, %p140
      %p142 = scmp.ne.s32.totalorder %s134, %s136
      %p143 = scmp.eq.s32.totalorder %s28, 3
      %p144 = por %p142, %p143
      %p145 = scmp.ne.s32.totalorder %s136, %s137
      %p146 = scmp.eq.s32.totalorder %s28, 0
      %p147 = por %p145, %p146
      %p148 = scmp.ne.s32.totalorder %s136, %s137
      %p149 = scmp.eq.s32.totalorder %s29, 3
      %p150 = por %p148, %p149
      %p152 = scmp.ne.s32.totalorder %s137, %s151
      %p153 = scmp.eq.s32.totalorder %s29, 0
      %p154 = por %p152, %p153
      %s155 = ssub.s32 %s30, %s42
      %s156 = ssub.s32 %s31, %s38
      %s157 = sor.u32 %s155, %s156
      %p158 = scmp.eq.s32.totalorder %s157, 0
      %s160 = sadd.s32 %s159, 1
      %s161 = scalar_select %p158, %s159, %s160
      %p164 = pneg %p158
      %p165 = scmp.eq.s32.totalorder %s23, 3
      %p166 = por %p164, %p165
      %p167 = scmp.ne.s32.totalorder %s159, %s162
      %p168 = scmp.eq.s32.totalorder %s23, 0
      %p169 = por %p167, %p168
      %p170 = scmp.ne.s32.totalorder %s159, %s162
      %p171 = scmp.eq.s32.totalorder %s28, 3
      %p172 = por %p170, %p171
      %p173 = scmp.ne.s32.totalorder %s162, %s163
      %p174 = scmp.eq.s32.totalorder %s28, 0
      %p175 = por %p173, %p174
      %p176 = scmp.ne.s32.totalorder %s162, %s163
      %p177 = scmp.eq.s32.totalorder %s29, 3
      %p178 = por %p176, %p177
      %p180 = scmp.ne.s32.totalorder %s163, %s179
      %p181 = scmp.eq.s32.totalorder %s29, 0
      %p182 = por %p180, %p181
      %s183 = ssub.s32 %s30, %s42
      %s184 = ssub.s32 %s31, %s38
      %s185 = sor.u32 %s183, %s184
      %p186 = scmp.eq.s32.totalorder %s185, 0
      %s188 = sadd.s32 %s187, 1
      %s189 = scalar_select %p186, %s187, %s188
      %p192 = pneg %p186
      %p193 = scmp.eq.s32.totalorder %s23, 3
      %p194 = por %p192, %p193
      %p195 = scmp.ne.s32.totalorder %s187, %s190
      %p196 = scmp.eq.s32.totalorder %s23, 0
      %p197 = por %p195, %p196
      %p198 = scmp.ne.s32.totalorder %s187, %s190
      %p199 = scmp.eq.s32.totalorder %s28, 3
      %p200 = por %p198, %p199
      %p201 = scmp.ne.s32.totalorder %s190, %s191
      %p202 = scmp.eq.s32.totalorder %s28, 0
      %p203 = por %p201, %p202
      %p204 = scmp.ne.s32.totalorder %s190, %s191
      %p205 = scmp.eq.s32.totalorder %s29, 3
      %p206 = por %p204, %p205
      %p208 = scmp.ne.s32.totalorder %s191, %s207
      %p209 = scmp.eq.s32.totalorder %s29, 0
      %p210 = por %p208, %p209
      %p211 = scmp.le.s32.totalorder 1, %s23
      %p212 = scmp.lt.s32.totalorder %s23, 5
      %p213 = pnand %p211, %p212
      %p214 = pneg %p213
      // Predicated region
      $region9: #{tpu_custom_call.1} parent=5 // pred_check
        _
      $region10: #{tpu_custom_call.1} parent=5 // pred_check_branch
        %216 = sbr.rel (%p213) target = $region12
      $region11: #{tpu_custom_call.1} parent=5 // pred_region
        %s217 = ssub.s32 %s23, 1
        // Predicated region
        $region13: #{tpu_custom_call.1} parent=11 // pred_check
          %p218 = pneg %p84
        $region14: #{tpu_custom_call.1} parent=11 // pred_check_branch
          %220 = sbr.rel (%p218) target = $region16
        $region15: #{tpu_custom_call.1} parent=11 // pred_region
          %s222 = ssub.s32 2048, 2048
          %223 = vsyncadd [#allocation6], %s222
          %s224 = sshll.u32 [#allocation5], 4
          %s225 = int_to_ptr.vmem [resolvable:$true] %s224
          %230 = dma.hbm_to_vmem [thread:$0]  %s1, 2048, %s225, [#allocation6], 128, 128, 8
        $region16: #{tpu_custom_call.1} parent=11 // pred_fallthru
          _
        // Predicated region
        $region17: #{tpu_custom_call.1} parent=11 // pred_check
          %p231 = pneg %p105
        $region18: #{tpu_custom_call.1} parent=11 // pred_check_branch
          %233 = sbr.rel (%p231) target = $region20
        $region19: #{tpu_custom_call.1} parent=11 // pred_region
          _
        $region20: #{tpu_custom_call.1} parent=11 // pred_fallthru
          _
        // Predicated region
        $region21: #{tpu_custom_call.1} parent=11 // pred_check
          %p234 = pneg %p126
        $region22: #{tpu_custom_call.1} parent=11 // pred_check_branch
          %236 = sbr.rel (%p234) target = $region24
        $region23: #{tpu_custom_call.1} parent=11 // pred_region
          %s238 = ssub.s32 4096, 4096
          %239 = vsyncadd [#allocation6], %s238
          %s240 = sshll.u32 [#allocation7], 4
          %s241 = int_to_ptr.vmem [resolvable:$true] %s240
          %246 = dma.hbm_to_vmem [thread:$0]  %s3, 4096, %s241, [#allocation6], 256, 256, 16
        $region24: #{tpu_custom_call.1} parent=11 // pred_fallthru
          _
        // Predicated region
        $region25: #{tpu_custom_call.1} parent=11 // pred_check
          %p247 = pneg %p147
        $region26: #{tpu_custom_call.1} parent=11 // pred_check_branch
          %249 = sbr.rel (%p247) target = $region28
        $region27: #{tpu_custom_call.1} parent=11 // pred_region
          _
        $region28: #{tpu_custom_call.1} parent=11 // pred_fallthru
          _
      $region12: #{tpu_custom_call.1} parent=5 // pred_fallthru
        _
      %p250 = scmp.lt.s32.totalorder %s23, 4
      // Predicated region
      $region29: #{tpu_custom_call.1} parent=5 // pred_check
        %p251 = pneg %p250
      $region30: #{tpu_custom_call.1} parent=5 // pred_check_branch
        %253 = sbr.rel (%p251) target = $region32
      $region31: #{tpu_custom_call.1} parent=5 // pred_region
        // Predicated region
        $region33: #{tpu_custom_call.1} parent=31 // pred_check
          %p254 = pneg %p57
        $region34: #{tpu_custom_call.1} parent=31 // pred_check_branch
          %256 = sbr.rel (%p254) target = $region36
        $region35: #{tpu_custom_call.1} parent=31 // pred_region
          %s257 = sand.u32 %s47, 1
          %s258 = scalar_lea.sflag [#allocation3], %s257
          %s259 = sand.u32 %s47, 1
          %s260 = smul.addr %s259, 128
          %s261 = scalar_lea.vmem [#allocation2], %s260
          %s262 = smul.u32 16, %s31
          %s264 = ssub.s32 2048, 2048
          %265 = vsyncadd %s258, %s264
          %s266 = smul.addr %s30, 32
          %s267 = sadd.s32 %s262, %s266
          %s268 = smul.addr %s267, 128
          %s269 = scalar_lea.hbm %s0, %s268
          %s270 = sshll.u32 %s261, 4
          %s271 = int_to_ptr.vmem [resolvable:$true] %s270
          %276 = dma.hbm_to_vmem [thread:$0]  %s269, 2048, %s271, %s258, 128, 128, 8
        $region36: #{tpu_custom_call.1} parent=31 // pred_fallthru
          _
      $region32: #{tpu_custom_call.1} parent=5 // pred_fallthru
        _
      %p277 = scmp.le.s32.totalorder 1, %s23
      %p278 = scmp.lt.s32.totalorder %s23, 5
      %p279 = pnand %p277, %p278
      %p280 = pneg %p279
      // Predicated region
      $region37: #{tpu_custom_call.1} parent=5 // pred_check
        _
      $region38: #{tpu_custom_call.1} parent=5 // pred_check_branch
        %282 = sbr.rel (%p279) target = $region40
      $region39: #{tpu_custom_call.1} parent=5 // pred_region
        %s283 = ssub.s32 %s23, 1
        %s284 = sand.u32 %s50, 1
        %s285 = scalar_lea.sflag [#allocation3], %s284
        %s286 = sand.u32 %s50, 1
        %s287 = smul.addr %s286, 128
        %s288 = scalar_lea.vmem [#allocation2], %s287
        // Predicated region
        $region41: #{tpu_custom_call.1} parent=39 // pred_check
          %p289 = pneg %p63
        $region42: #{tpu_custom_call.1} parent=39 // pred_check_branch
          %291 = sbr.rel (%p289) target = $region44
        $region43: #{tpu_custom_call.1} parent=39 // pred_region
          %292 = dma.done %s285, 2048
        $region44: #{tpu_custom_call.1} parent=39 // pred_fallthru
          _
        // Predicated region
        $region45: #{tpu_custom_call.1} parent=39 // pred_check
          %p293 = pneg %p84
        $region46: #{tpu_custom_call.1} parent=39 // pred_check_branch
          %295 = sbr.rel (%p293) target = $region48
        $region47: #{tpu_custom_call.1} parent=39 // pred_region
          %296 = dma.done [#allocation6], 2048
        $region48: #{tpu_custom_call.1} parent=39 // pred_fallthru
          _
        // Predicated region
        $region49: #{tpu_custom_call.1} parent=39 // pred_check
          %p297 = pneg %p126
        $region50: #{tpu_custom_call.1} parent=39 // pred_check_branch
          %299 = sbr.rel (%p297) target = $region52
        $region51: #{tpu_custom_call.1} parent=39 // pred_region
          %300 = dma.done [#allocation6], 4096
        $region52: #{tpu_custom_call.1} parent=39 // pred_fallthru
          _
        %s301 = sand.u32 %s50, 1
        %s302 = scalar_lea.sflag [#allocation3], %s301
        %s303 = sand.u32 %s50, 1
        %s304 = smul.addr %s303, 128
        %s305 = scalar_lea.vmem [#allocation2], %s304
        %p306 = pneg %p63
        %p307 = pneg %p60
        %p308 = pneg %p84
        %p309 = pneg %p81
        %p310 = pneg %p105
        %p311 = pneg %p102
        %p312 = pneg %p126
        %p313 = pneg %p123
        %p314 = pneg %p147
        %p315 = pneg %p144
        %p316 = pneg %p175
        %p317 = pneg %p172
        %s318 = sand.u32 %s162, 1
        %s319 = scalar_lea.sflag [#allocation4], %s318
        %s320 = sand.u32 %s162, 1
        %s321 = smul.addr %s320, 128
        %s322 = scalar_lea.vmem [#allocation8], %s321
        %p323 = pneg %p203
        %p324 = pneg %p200
        %s325 = sand.u32 %s190, 1
        %s326 = scalar_lea.sflag [#allocation10], %s325
        %s327 = sand.u32 %s190, 1
        %s328 = smul.addr %s327, 256
        %s329 = scalar_lea.vmem [#allocation9], %s328
        %s330 = smul.u32 16, %s33
        %s331 = smul.u32 16, %s33
        %s332 = smul.u32 16, %s33
        %v333 = vld [vmem:[%s288] sm:$0xff]
        %v334 = vld [vmem:[%s288 + $0x8] sm:$0xff]
        %v335 = vld [vmem:[%s288 + $0x10] sm:$0xff]
        %v336 = vld [vmem:[%s288 + $0x18] sm:$0xff]
        %v337 = vld [vmem:[%s288 + $0x20] sm:$0xff]
        %v338 = vld [vmem:[%s288 + $0x28] sm:$0xff]
        %v339 = vld [vmem:[%s288 + $0x30] sm:$0xff]
        %v340 = vld [vmem:[%s288 + $0x38] sm:$0xff]
        %v341 = vld [vmem:[%s288 + $0x40] sm:$0xff]
        %v342 = vld [vmem:[%s288 + $0x48] sm:$0xff]
        %v343 = vld [vmem:[%s288 + $0x50] sm:$0xff]
        %v344 = vld [vmem:[%s288 + $0x58] sm:$0xff]
        %v345 = vld [vmem:[%s288 + $0x60] sm:$0xff]
        %v346 = vld [vmem:[%s288 + $0x68] sm:$0xff]
        %v347 = vld [vmem:[%s288 + $0x70] sm:$0xff]
        %v348 = vld [vmem:[%s288 + $0x78] sm:$0xff]
        %v349 = vld [vmem:[#allocation5] sm:$0xff]
        %v350 = vld [vmem:[#allocation5 + $0x8] sm:$0xff]
        %v351 = vld [vmem:[#allocation5 + $0x10] sm:$0xff]
        %v352 = vld [vmem:[#allocation5 + $0x18] sm:$0xff]
        %v353 = vld [vmem:[#allocation5 + $0x20] sm:$0xff]
        %v354 = vld [vmem:[#allocation5 + $0x28] sm:$0xff]
        %v355 = vld [vmem:[#allocation5 + $0x30] sm:$0xff]
        %v356 = vld [vmem:[#allocation5 + $0x38] sm:$0xff]
        %v357 = vld [vmem:[#allocation5 + $0x40] sm:$0xff]
        %v358 = vld [vmem:[#allocation5 + $0x48] sm:$0xff]
        %v359 = vld [vmem:[#allocation5 + $0x50] sm:$0xff]
        %v360 = vld [vmem:[#allocation5 + $0x58] sm:$0xff]
        %v361 = vld [vmem:[#allocation5 + $0x60] sm:$0xff]
        %v362 = vld [vmem:[#allocation5 + $0x68] sm:$0xff]
        %v363 = vld [vmem:[#allocation5 + $0x70] sm:$0xff]
        %v364 = vld [vmem:[#allocation5 + $0x78] sm:$0xff]
        %v365 = vld [vmem:[%s2] sm:$0x1]
        %v367 = vlaneseq
        %v368 = vshrl.u32 %v367, 7
        %v369 = vsub.s32 0, %v368
        %v370 = vrot.slane %v365, %v369
        %372 = vmatprep.subr.mxu0 0.0
        %373 = vmatpush1.msra.mxu0 %v364
        %374 = vmatprep.subr.mxu0 0.0
        %375 = vmatpush1.msra.mxu0 %v363
        %376 = vmatprep.subr.mxu0 0.0
        %377 = vmatpush1.msra.mxu0 %v362
        %378 = vmatprep.subr.mxu0 0.0
        %379 = vmatpush1.msra.mxu0 %v361
        %380 = vmatprep.subr.mxu0 0.0
        %381 = vmatpush1.msra.mxu0 %v360
        %382 = vmatprep.subr.mxu0 0.0
        %383 = vmatpush1.msra.mxu0 %v359
        %384 = vmatprep.subr.mxu0 0.0
        %385 = vmatpush1.msra.mxu0 %v358
        %386 = vmatprep.subr.mxu0 0.0
        %387 = vmatpush1.msra.mxu0 %v357
        %388 = vmatprep.subr.mxu0 0.0
        %389 = vmatpush1.msra.mxu0 %v356
        %390 = vmatprep.subr.mxu0 0.0
        %391 = vmatpush1.msra.mxu0 %v355
        %392 = vmatprep.subr.mxu0 0.0
        %393 = vmatpush1.msra.mxu0 %v354
        %394 = vmatprep.subr.mxu0 0.0
        %395 = vmatpush1.msra.mxu0 %v353
        %396 = vmatprep.subr.mxu0 0.0
        %397 = vmatpush1.msra.mxu0 %v352
        %398 = vmatprep.subr.mxu0 0.0
        %399 = vmatpush1.msra.mxu0 %v351
        %400 = vmatprep.subr.mxu0 0.0
        %401 = vmatpush1.msra.mxu0 %v350
        %402 = vmatprep.subr.mxu0 0.0
        %403 = vmatpush1.msra.mxu0 %v349
        %404 = vmatprep.subr.mxu0 0.0
        %405 = vmatpush2.msra.mxu0 0.0
        %406 = vmatprep.subr.mxu0 0.0
        %407 = vmatpush2.msra.mxu0 0.0
        %408 = vmatprep.subr.mxu0 0.0
        %409 = vmatpush2.msra.mxu0 0.0
        %410 = vmatprep.subr.mxu0 0.0
        %411 = vmatpush2.msra.mxu0 0.0
        %412 = vmatprep.subr.mxu0 0.0
        %413 = vmatpush2.msra.mxu0 0.0
        %414 = vmatprep.subr.mxu0 0.0
        %415 = vmatpush2.msra.mxu0 0.0
        %416 = vmatprep.subr.mxu0 0.0
        %417 = vmatpush2.msra.mxu0 0.0
        %418 = vmatprep.subr.mxu0 0.0
        %419 = vmatpush2.msra.mxu0 0.0
        %420 = vmatprep.subr.mxu0 0.0
        %421 = vmatpush2.msra.mxu0 0.0
        %422 = vmatprep.subr.mxu0 0.0
        %423 = vmatpush2.msra.mxu0 0.0
        %424 = vmatprep.subr.mxu0 0.0
        %425 = vmatpush2.msra.mxu0 0.0
        %426 = vmatprep.subr.mxu0 0.0
        %427 = vmatpush2.msra.mxu0 0.0
        %428 = vmatprep.subr.mxu0 0.0
        %429 = vmatpush2.msra.mxu0 0.0
        %430 = vmatprep.subr.mxu0 0.0
        %431 = vmatpush2.msra.mxu0 0.0
        %432 = vmatprep.subr.mxu0 0.0
        %433 = vmatpush2.msra.mxu0 0.0
        %434 = vmatprep.subr.mxu0 0.0
        %435 = vmatpush2.msra.mxu0 0.0
        %436 = vmatprep.mubr.f32.mxu0 0.0
        %437 = vmatmul.mubr.f32.gmra.mxu0 %v333
        %v438 = vpop.f32.mrf.mxu0
        %v439 = vadd.f32 %v370, %v438
        %v440 = vpop.f32.mrf.mxu0
        %441 = vmatprep.mubr.f32.mxu0 0.0
        %442 = vmatmul.mubr.f32.gmra.mxu0 %v334
        %v443 = vpop.f32.mrf.mxu0
        %v444 = vadd.f32 %v370, %v443
        %v445 = vpop.f32.mrf.mxu0
        %446 = vmatprep.mubr.f32.mxu0 0.0
        %447 = vmatmul.mubr.f32.gmra.mxu0 %v335
        %v448 = vpop.f32.mrf.mxu0
        %v449 = vadd.f32 %v370, %v448
        %v450 = vpop.f32.mrf.mxu0
        %451 = vmatprep.mubr.f32.mxu0 0.0
        %452 = vmatmul.mubr.f32.gmra.mxu0 %v336
        %v453 = vpop.f32.mrf.mxu0
        %v454 = vadd.f32 %v370, %v453
        %v455 = vpop.f32.mrf.mxu0
        %456 = vmatprep.mubr.f32.mxu0 0.0
        %457 = vmatmul.mubr.f32.gmra.mxu0 %v337
        %v458 = vpop.f32.mrf.mxu0
        %v459 = vadd.f32 %v370, %v458
        %v460 = vpop.f32.mrf.mxu0
        %461 = vmatprep.mubr.f32.mxu0 0.0
        %462 = vmatmul.mubr.f32.gmra.mxu0 %v338
        %v463 = vpop.f32.mrf.mxu0
        %v464 = vadd.f32 %v370, %v463
        %v465 = vpop.f32.mrf.mxu0
        %466 = vmatprep.mubr.f32.mxu0 0.0
        %467 = vmatmul.mubr.f32.gmra.mxu0 %v339
        %v468 = vpop.f32.mrf.mxu0
        %v469 = vadd.f32 %v370, %v468
        %v470 = vpop.f32.mrf.mxu0
        %471 = vmatprep.mubr.f32.mxu0 0.0
        %472 = vmatmul.mubr.f32.gmra.mxu0 %v340
        %v473 = vpop.f32.mrf.mxu0
        %v474 = vadd.f32 %v370, %v473
        %v475 = vpop.f32.mrf.mxu0
        %476 = vmatprep.mubr.f32.mxu0 0.0
        %477 = vmatmul.mubr.f32.gmra.mxu0 %v341
        %v478 = vpop.f32.mrf.mxu0
        %v479 = vadd.f32 %v370, %v478
        %v480 = vpop.f32.mrf.mxu0
        %481 = vmatprep.mubr.f32.mxu0 0.0
        %482 = vmatmul.mubr.f32.gmra.mxu0 %v342
        %v483 = vpop.f32.mrf.mxu0
        %v484 = vadd.f32 %v370, %v483
        %v485 = vpop.f32.mrf.mxu0
        %486 = vmatprep.mubr.f32.mxu0 0.0
        %487 = vmatmul.mubr.f32.gmra.mxu0 %v343
        %v488 = vpop.f32.mrf.mxu0
        %v489 = vadd.f32 %v370, %v488
        %v490 = vpop.f32.mrf.mxu0
        %491 = vmatprep.mubr.f32.mxu0 0.0
        %492 = vmatmul.mubr.f32.gmra.mxu0 %v344
        %v493 = vpop.f32.mrf.mxu0
        %v494 = vadd.f32 %v370, %v493
        %v495 = vpop.f32.mrf.mxu0
        %496 = vmatprep.mubr.f32.mxu0 0.0
        %497 = vmatmul.mubr.f32.gmra.mxu0 %v345
        %v498 = vpop.f32.mrf.mxu0
        %v499 = vadd.f32 %v370, %v498
        %v500 = vpop.f32.mrf.mxu0
        %501 = vmatprep.mubr.f32.mxu0 0.0
        %502 = vmatmul.mubr.f32.gmra.mxu0 %v346
        %v503 = vpop.f32.mrf.mxu0
        %v504 = vadd.f32 %v370, %v503
        %v505 = vpop.f32.mrf.mxu0
        %506 = vmatprep.mubr.f32.mxu0 0.0
        %507 = vmatmul.mubr.f32.gmra.mxu0 %v347
        %v508 = vpop.f32.mrf.mxu0
        %v509 = vadd.f32 %v370, %v508
        %v510 = vpop.f32.mrf.mxu0
        %511 = vmatprep.mubr.f32.mxu0 0.0
        %512 = vmatmul.mubr.f32.gmra.mxu0 %v348
        %v513 = vpop.f32.mrf.mxu0
        %v514 = vadd.f32 %v370, %v513
        %v515 = vpop.f32.mrf.mxu0
        %516 = vdwg.mxu0
        %v517 = vld [vmem:[#allocation7] sm:$0xff]
        %v518 = vld [vmem:[#allocation7 + $0x8] sm:$0xff]
        %v519 = vld [vmem:[#allocation7 + $0x10] sm:$0xff]
        %v520 = vld [vmem:[#allocation7 + $0x18] sm:$0xff]
        %v521 = vld [vmem:[#allocation7 + $0x20] sm:$0xff]
        %v522 = vld [vmem:[#allocation7 + $0x28] sm:$0xff]
        %v523 = vld [vmem:[#allocation7 + $0x30] sm:$0xff]
        %v524 = vld [vmem:[#allocation7 + $0x38] sm:$0xff]
        %v525 = vld [vmem:[#allocation7 + $0x40] sm:$0xff]
        %v526 = vld [vmem:[#allocation7 + $0x48] sm:$0xff]
        %v527 = vld [vmem:[#allocation7 + $0x50] sm:$0xff]
        %v528 = vld [vmem:[#allocation7 + $0x58] sm:$0xff]
        %v529 = vld [vmem:[#allocation7 + $0x60] sm:$0xff]
        %v530 = vld [vmem:[#allocation7 + $0x68] sm:$0xff]
        %v531 = vld [vmem:[#allocation7 + $0x70] sm:$0xff]
        %v532 = vld [vmem:[#allocation7 + $0x78] sm:$0xff]
        %v533 = vld [vmem:[#allocation7 + $0x80] sm:$0xff]
        %v534 = vld [vmem:[#allocation7 + $0x88] sm:$0xff]
        %v535 = vld [vmem:[#allocation7 + $0x90] sm:$0xff]
        %v536 = vld [vmem:[#allocation7 + $0x98] sm:$0xff]
        %v537 = vld [vmem:[#allocation7 + $0xa0] sm:$0xff]
        %v538 = vld [vmem:[#allocation7 + $0xa8] sm:$0xff]
        %v539 = vld [vmem:[#allocation7 + $0xb0] sm:$0xff]
        %v540 = vld [vmem:[#allocation7 + $0xb8] sm:$0xff]
        %v541 = vld [vmem:[#allocation7 + $0xc0] sm:$0xff]
        %v542 = vld [vmem:[#allocation7 + $0xc8] sm:$0xff]
        %v543 = vld [vmem:[#allocation7 + $0xd0] sm:$0xff]
        %v544 = vld [vmem:[#allocation7 + $0xd8] sm:$0xff]
        %v545 = vld [vmem:[#allocation7 + $0xe0] sm:$0xff]
        %v546 = vld [vmem:[#allocation7 + $0xe8] sm:$0xff]
        %v547 = vld [vmem:[#allocation7 + $0xf0] sm:$0xff]
        %v548 = vld [vmem:[#allocation7 + $0xf8] sm:$0xff]
        %v549 = vld [vmem:[%s4] sm:$0x3]
        %v551 = vlaneseq
        %v552 = vshrl.u32 %v551, 7
        %v553 = vsub.s32 0, %v552
        %v554 = vrot.slane %v549, %v553
        %v555 = vlaneseq
        %v556 = vshrl.u32 %v555, 7
        %v557 = vsub.s32 1, %v556
        %v558 = vrot.slane %v549, %v557
        %561 = vmatprep.subr.mxu0 %v548
        %562 = vmatpush1.msra.mxu0 %v547
        %563 = vmatprep.subr.mxu0 %v546
        %564 = vmatpush1.msra.mxu0 %v545
        %565 = vmatprep.subr.mxu0 %v544
        %566 = vmatpush1.msra.mxu0 %v543
        %567 = vmatprep.subr.mxu0 %v542
        %568 = vmatpush1.msra.mxu0 %v541
        %569 = vmatprep.subr.mxu0 %v540
        %570 = vmatpush1.msra.mxu0 %v539
        %571 = vmatprep.subr.mxu0 %v538
        %572 = vmatpush1.msra.mxu0 %v537
        %573 = vmatprep.subr.mxu0 %v536
        %574 = vmatpush1.msra.mxu0 %v535
        %575 = vmatprep.subr.mxu0 %v534
        %576 = vmatpush1.msra.mxu0 %v533
        %577 = vmatprep.subr.mxu0 %v532
        %578 = vmatpush1.msra.mxu0 %v531
        %579 = vmatprep.subr.mxu0 %v530
        %580 = vmatpush1.msra.mxu0 %v529
        %581 = vmatprep.subr.mxu0 %v528
        %582 = vmatpush1.msra.mxu0 %v527
        %583 = vmatprep.subr.mxu0 %v526
        %584 = vmatpush1.msra.mxu0 %v525
        %585 = vmatprep.subr.mxu0 %v524
        %586 = vmatpush1.msra.mxu0 %v523
        %587 = vmatprep.subr.mxu0 %v522
        %588 = vmatpush1.msra.mxu0 %v521
        %589 = vmatprep.subr.mxu0 %v520
        %590 = vmatpush1.msra.mxu0 %v519
        %591 = vmatprep.subr.mxu0 %v518
        %592 = vmatpush1.msra.mxu0 %v517
        %593 = vmatprep.subr.mxu0 0.0
        %594 = vmatpush2.msra.mxu0 0.0
        %595 = vmatprep.subr.mxu0 0.0
        %596 = vmatpush2.msra.mxu0 0.0
        %597 = vmatprep.subr.mxu0 0.0
        %598 = vmatpush2.msra.mxu0 0.0
        %599 = vmatprep.subr.mxu0 0.0
        %600 = vmatpush2.msra.mxu0 0.0
        %601 = vmatprep.subr.mxu0 0.0
        %602 = vmatpush2.msra.mxu0 0.0
        %603 = vmatprep.subr.mxu0 0.0
        %604 = vmatpush2.msra.mxu0 0.0
        %605 = vmatprep.subr.mxu0 0.0
        %606 = vmatpush2.msra.mxu0 0.0
        %607 = vmatprep.subr.mxu0 0.0
        %608 = vmatpush2.msra.mxu0 0.0
        %609 = vmatprep.subr.mxu0 0.0
        %610 = vmatpush2.msra.mxu0 0.0
        %611 = vmatprep.subr.mxu0 0.0
        %612 = vmatpush2.msra.mxu0 0.0
        %613 = vmatprep.subr.mxu0 0.0
        %614 = vmatpush2.msra.mxu0 0.0
        %615 = vmatprep.subr.mxu0 0.0
        %616 = vmatpush2.msra.mxu0 0.0
        %617 = vmatprep.subr.mxu0 0.0
        %618 = vmatpush2.msra.mxu0 0.0
        %619 = vmatprep.subr.mxu0 0.0
        %620 = vmatpush2.msra.mxu0 0.0
        %621 = vmatprep.subr.mxu0 0.0
        %622 = vmatpush2.msra.mxu0 0.0
        %623 = vmatprep.subr.mxu0 0.0
        %624 = vmatpush2.msra.mxu0 0.0
        %625 = vmatprep.mubr.f32.mxu0 0.0
        %626 = vmatmul.mubr.f32.gmra.mxu0 %v333
        %v627 = vpop.f32.mrf.mxu0
        %v628 = vadd.f32 %v554, %v627
        %v629 = vpop.f32.mrf.mxu0
        %v630 = vadd.f32 %v558, %v629
        %631 = vmatprep.mubr.f32.mxu0 0.0
        %632 = vmatmul.mubr.f32.gmra.mxu0 %v334
        %v633 = vpop.f32.mrf.mxu0
        %v634 = vadd.f32 %v554, %v633
        %v635 = vpop.f32.mrf.mxu0
        %v636 = vadd.f32 %v558, %v635
        %637 = vmatprep.mubr.f32.mxu0 0.0
        %638 = vmatmul.mubr.f32.gmra.mxu0 %v335
        %v639 = vpop.f32.mrf.mxu0
        %v640 = vadd.f32 %v554, %v639
        %v641 = vpop.f32.mrf.mxu0
        %v642 = vadd.f32 %v558, %v641
        %643 = vmatprep.mubr.f32.mxu0 0.0
        %644 = vmatmul.mubr.f32.gmra.mxu0 %v336
        %v645 = vpop.f32.mrf.mxu0
        %v646 = vadd.f32 %v554, %v645
        %v647 = vpop.f32.mrf.mxu0
        %v648 = vadd.f32 %v558, %v647
        %649 = vmatprep.mubr.f32.mxu0 0.0
        %650 = vmatmul.mubr.f32.gmra.mxu0 %v337
        %v651 = vpop.f32.mrf.mxu0
        %v652 = vadd.f32 %v554, %v651
        %v653 = vpop.f32.mrf.mxu0
        %v654 = vadd.f32 %v558, %v653
        %655 = vmatprep.mubr.f32.mxu0 0.0
        %656 = vmatmul.mubr.f32.gmra.mxu0 %v338
        %v657 = vpop.f32.mrf.mxu0
        %v658 = vadd.f32 %v554, %v657
        %v659 = vpop.f32.mrf.mxu0
        %v660 = vadd.f32 %v558, %v659
        %661 = vmatprep.mubr.f32.mxu0 0.0
        %662 = vmatmul.mubr.f32.gmra.mxu0 %v339
        %v663 = vpop.f32.mrf.mxu0
        %v664 = vadd.f32 %v554, %v663
        %v665 = vpop.f32.mrf.mxu0
        %v666 = vadd.f32 %v558, %v665
        %667 = vmatprep.mubr.f32.mxu0 0.0
        %668 = vmatmul.mubr.f32.gmra.mxu0 %v340
        %v669 = vpop.f32.mrf.mxu0
        %v670 = vadd.f32 %v554, %v669
        %v671 = vpop.f32.mrf.mxu0
        %v672 = vadd.f32 %v558, %v671
        %673 = vmatprep.mubr.f32.mxu0 0.0
        %674 = vmatmul.mubr.f32.gmra.mxu0 %v341
        %v675 = vpop.f32.mrf.mxu0
        %v676 = vadd.f32 %v554, %v675
        %v677 = vpop.f32.mrf.mxu0
        %v678 = vadd.f32 %v558, %v677
        %679 = vmatprep.mubr.f32.mxu0 0.0
        %680 = vmatmul.mubr.f32.gmra.mxu0 %v342
        %v681 = vpop.f32.mrf.mxu0
        %v682 = vadd.f32 %v554, %v681
        %v683 = vpop.f32.mrf.mxu0
        %v684 = vadd.f32 %v558, %v683
        %685 = vmatprep.mubr.f32.mxu0 0.0
        %686 = vmatmul.mubr.f32.gmra.mxu0 %v343
        %v687 = vpop.f32.mrf.mxu0
        %v688 = vadd.f32 %v554, %v687
        %v689 = vpop.f32.mrf.mxu0
        %v690 = vadd.f32 %v558, %v689
        %691 = vmatprep.mubr.f32.mxu0 0.0
        %692 = vmatmul.mubr.f32.gmra.mxu0 %v344
        %v693 = vpop.f32.mrf.mxu0
        %v694 = vadd.f32 %v554, %v693
        %v695 = vpop.f32.mrf.mxu0
        %v696 = vadd.f32 %v558, %v695
        %697 = vmatprep.mubr.f32.mxu0 0.0
        %698 = vmatmul.mubr.f32.gmra.mxu0 %v345
        %v699 = vpop.f32.mrf.mxu0
        %v700 = vadd.f32 %v554, %v699
        %v701 = vpop.f32.mrf.mxu0
        %v702 = vadd.f32 %v558, %v701
        %703 = vmatprep.mubr.f32.mxu0 0.0
        %704 = vmatmul.mubr.f32.gmra.mxu0 %v346
        %v705 = vpop.f32.mrf.mxu0
        %v706 = vadd.f32 %v554, %v705
        %v707 = vpop.f32.mrf.mxu0
        %v708 = vadd.f32 %v558, %v707
        %709 = vmatprep.mubr.f32.mxu0 0.0
        %710 = vmatmul.mubr.f32.gmra.mxu0 %v347
        %v711 = vpop.f32.mrf.mxu0
        %v712 = vadd.f32 %v554, %v711
        %v713 = vpop.f32.mrf.mxu0
        %v714 = vadd.f32 %v558, %v713
        %715 = vmatprep.mubr.f32.mxu0 0.0
        %716 = vmatmul.mubr.f32.gmra.mxu0 %v348
        %v717 = vpop.f32.mrf.mxu0
        %v718 = vadd.f32 %v554, %v717
        %v719 = vpop.f32.mrf.mxu0
        %v720 = vadd.f32 %v558, %v719
        %721 = vdwg.mxu0
        %722 = vst [vmem:[%s322] sm:$0xff] %v439
        %723 = vst [vmem:[%s322 + $0x8] sm:$0xff] %v444
        %724 = vst [vmem:[%s322 + $0x10] sm:$0xff] %v449
        %725 = vst [vmem:[%s322 + $0x18] sm:$0xff] %v454
        %726 = vst [vmem:[%s322 + $0x20] sm:$0xff] %v459
        %727 = vst [vmem:[%s322 + $0x28] sm:$0xff] %v464
        %728 = vst [vmem:[%s322 + $0x30] sm:$0xff] %v469
        %729 = vst [vmem:[%s322 + $0x38] sm:$0xff] %v474
        %730 = vst [vmem:[%s322 + $0x40] sm:$0xff] %v479
        %731 = vst [vmem:[%s322 + $0x48] sm:$0xff] %v484
        %732 = vst [vmem:[%s322 + $0x50] sm:$0xff] %v489
        %733 = vst [vmem:[%s322 + $0x58] sm:$0xff] %v494
        %734 = vst [vmem:[%s322 + $0x60] sm:$0xff] %v499
        %735 = vst [vmem:[%s322 + $0x68] sm:$0xff] %v504
        %736 = vst [vmem:[%s322 + $0x70] sm:$0xff] %v509
        %737 = vst [vmem:[%s322 + $0x78] sm:$0xff] %v514
        %738 = vst [vmem:[%s329] sm:$0xff] %v628
        %739 = vst [vmem:[%s329 + $0x8] sm:$0xff] %v630
        %740 = vst [vmem:[%s329 + $0x10] sm:$0xff] %v634
        %741 = vst [vmem:[%s329 + $0x18] sm:$0xff] %v636
        %742 = vst [vmem:[%s329 + $0x20] sm:$0xff] %v640
        %743 = vst [vmem:[%s329 + $0x28] sm:$0xff] %v642
        %744 = vst [vmem:[%s329 + $0x30] sm:$0xff] %v646
        %745 = vst [vmem:[%s329 + $0x38] sm:$0xff] %v648
        %746 = vst [vmem:[%s329 + $0x40] sm:$0xff] %v652
        %747 = vst [vmem:[%s329 + $0x48] sm:$0xff] %v654
        %748 = vst [vmem:[%s329 + $0x50] sm:$0xff] %v658
        %749 = vst [vmem:[%s329 + $0x58] sm:$0xff] %v660
        %750 = vst [vmem:[%s329 + $0x60] sm:$0xff] %v664
        %751 = vst [vmem:[%s329 + $0x68] sm:$0xff] %v666
        %752 = vst [vmem:[%s329 + $0x70] sm:$0xff] %v670
        %753 = vst [vmem:[%s329 + $0x78] sm:$0xff] %v672
        %754 = vst [vmem:[%s329 + $0x80] sm:$0xff] %v676
        %755 = vst [vmem:[%s329 + $0x88] sm:$0xff] %v678
        %756 = vst [vmem:[%s329 + $0x90] sm:$0xff] %v682
        %757 = vst [vmem:[%s329 + $0x98] sm:$0xff] %v684
        %758 = vst [vmem:[%s329 + $0xa0] sm:$0xff] %v688
        %759 = vst [vmem:[%s329 + $0xa8] sm:$0xff] %v690
        %760 = vst [vmem:[%s329 + $0xb0] sm:$0xff] %v694
        %761 = vst [vmem:[%s329 + $0xb8] sm:$0xff] %v696
        %762 = vst [vmem:[%s329 + $0xc0] sm:$0xff] %v700
        %763 = vst [vmem:[%s329 + $0xc8] sm:$0xff] %v702
        %764 = vst [vmem:[%s329 + $0xd0] sm:$0xff] %v706
        %765 = vst [vmem:[%s329 + $0xd8] sm:$0xff] %v708
        %766 = vst [vmem:[%s329 + $0xe0] sm:$0xff] %v712
        %767 = vst [vmem:[%s329 + $0xe8] sm:$0xff] %v714
        %768 = vst [vmem:[%s329 + $0xf0] sm:$0xff] %v718
        %769 = vst [vmem:[%s329 + $0xf8] sm:$0xff] %v720
        %s770 = sand.u32 %s162, 1
        %s771 = scalar_lea.sflag [#allocation4], %s770
        %s772 = sand.u32 %s162, 1
        %s773 = smul.addr %s772, 128
        %s774 = scalar_lea.vmem [#allocation8], %s773
        %s775 = sand.u32 %s190, 1
        %s776 = scalar_lea.sflag [#allocation10], %s775
        %s777 = sand.u32 %s190, 1
        %s778 = smul.addr %s777, 256
        %s779 = scalar_lea.vmem [#allocation9], %s778
        // Predicated region
        $region53: #{tpu_custom_call.1} parent=39 // pred_check
          %p780 = pneg %p172
        $region54: #{tpu_custom_call.1} parent=39 // pred_check_branch
          %782 = sbr.rel (%p780) target = $region56
        $region55: #{tpu_custom_call.1} parent=39 // pred_region
          %s783 = smul.u32 16, %s33
          %s785 = ssub.s32 2048, 2048
          %786 = vsyncadd %s771, %s785
          %s787 = smul.addr %s32, 32
          %s788 = sadd.s32 %s783, %s787
          %s789 = smul.addr %s788, 128
          %s790 = scalar_lea.hbm %s5, %s789
          %s791 = sshll.u32 %s774, 4
          %s792 = int_to_ptr.vmem [resolvable:$true] %s791
          %797 = dma.vmem_to_hbm [thread:$0]  %s792, 2048, %s790, %s771, 128, 128, 8
        $region56: #{tpu_custom_call.1} parent=39 // pred_fallthru
          _
        // Predicated region
        $region57: #{tpu_custom_call.1} parent=39 // pred_check
          %p798 = pneg %p200
        $region58: #{tpu_custom_call.1} parent=39 // pred_check_branch
          %800 = sbr.rel (%p798) target = $region60
        $region59: #{tpu_custom_call.1} parent=39 // pred_region
          %s801 = smul.u32 16, %s33
          %s803 = ssub.s32 4096, 4096
          %804 = vsyncadd %s776, %s803
          %s805 = smul.addr %s801, 2
          %s806 = smul.addr %s32, 64
          %s807 = sadd.s32 %s805, %s806
          %s808 = smul.addr %s807, 128
          %s809 = scalar_lea.hbm %s6, %s808
          %s810 = sshll.u32 %s779, 4
          %s811 = int_to_ptr.vmem [resolvable:$true] %s810
          %816 = dma.vmem_to_hbm [thread:$0]  %s811, 4096, %s809, %s776, 256, 256, 16
        $region60: #{tpu_custom_call.1} parent=39 // pred_fallthru
          _
      $region40: #{tpu_custom_call.1} parent=5 // pred_fallthru
        _
      %p817 = scmp.le.s32.totalorder 2, %s23
      // Predicated region
      $region61: #{tpu_custom_call.1} parent=5 // pred_check
        %p818 = pneg %p817
      $region62: #{tpu_custom_call.1} parent=5 // pred_check_branch
        %820 = sbr.rel (%p818) target = $region64
      $region63: #{tpu_custom_call.1} parent=5 // pred_region
        %s821 = ssub.s32 %s23, 2
        // Predicated region
        $region65: #{tpu_custom_call.1} parent=63 // pred_check
          %p822 = pneg %p178
        $region66: #{tpu_custom_call.1} parent=63 // pred_check_branch
          %824 = sbr.rel (%p822) target = $region68
        $region67: #{tpu_custom_call.1} parent=63 // pred_region
          %s825 = sand.u32 %s163, 1
          %s826 = scalar_lea.sflag [#allocation4], %s825
          %s827 = sand.u32 %s163, 1
          %s828 = smul.addr %s827, 128
          %s829 = scalar_lea.vmem [#allocation8], %s828
          %830 = dma.done %s826, 2048
        $region68: #{tpu_custom_call.1} parent=63 // pred_fallthru
          _
        // Predicated region
        $region69: #{tpu_custom_call.1} parent=63 // pred_check
          %p831 = pneg %p206
        $region70: #{tpu_custom_call.1} parent=63 // pred_check_branch
          %833 = sbr.rel (%p831) target = $region72
        $region71: #{tpu_custom_call.1} parent=63 // pred_region
          %s834 = sand.u32 %s191, 1
          %s835 = scalar_lea.sflag [#allocation10], %s834
          %s836 = sand.u32 %s191, 1
          %s837 = smul.addr %s836, 256
          %s838 = scalar_lea.vmem [#allocation9], %s837
          %839 = dma.done %s835, 4096
        $region72: #{tpu_custom_call.1} parent=63 // pred_fallthru
          _
      $region64: #{tpu_custom_call.1} parent=5 // pred_fallthru
        _
    $region6: #{tpu_custom_call.1} parent=1 // loop_footer
      %s27 = sadd.s32 1, %s23
    $region7: #{tpu_custom_call.1} parent=1 // loop_footer_branch
      %22 = sbr.rel target = $region3
    $region8: #{tpu_custom_call.1} parent=1 // loop_exit
      _
    %840 = vsyncpa [#allocation3], 1
    %s841 = scalar_lea.sflag [#allocation3], 1
    %842 = vsyncpa %s841, 1
    %843 = vsyncpa [#allocation6], 1
    %844 = vsyncpa [#allocation4], 1
    %s845 = scalar_lea.sflag [#allocation4], 1
    %846 = vsyncpa %s845, 1
    %847 = vsyncpa [#allocation10], 1
    %s848 = scalar_lea.sflag [#allocation10], 1
    %849 = vsyncpa %s848, 1

</llo_original>
